<compile_context>
chip_gen: v6e
topology: v6e:2x2x1
jax: 0.10.0
libtpu: 0.0.40
codegen_flags: <defaults>
</compile_context>

<pallas_src>
import functools

import jax
import jax.numpy as jnp
from jax.experimental import pallas as pl
from jax.experimental.pallas import tpu as pltpu

GAMMA = 2.0          # FocalLoss(gamma=2) default
IGNORE_LABEL = 255   # stands in for config.ignore_label
MAX_HW_TILE = 131072  # hard cap on pixels (lanes) per grid step
MIN_HW_TILE = 512


def _round_up(x, m):
    return (x + m - 1) // m * m


def _round_down(x, m):
    return (x // m) * m


def _vmem_capacity_bytes():
    """Physical VMEM bytes; falls back to the smallest generation (v7x, 64MiB)."""
    try:
        info = pltpu.get_tpu_info()
        for name in ("vmem_capacity_bytes", "vmem_bytes"):
            cap = getattr(info, name, None)
            if cap:
                return int(cap)
    except Exception:
        pass
    return 64 << 20


def _focal_loss_kernel(preds_ref, label_ref, sum_ref, cnt_ref,
                       sum_acc, cnt_acc, *, gamma, ignore_label,
                       hw, hw_tile, num_j, need_pix_mask):
    # preds_ref : (1, C, T) float    label_ref : (1, 1, T) int32
    # sum_ref, cnt_ref : (1, 1, 1) f32 per-(image, split) partials
    # sum_acc, cnt_acc : (1, T) f32 lane-wide accumulators (VMEM scratch)
    j = pl.program_id(2)

    @pl.when(j == 0)
    def _():
        sum_acc[...] = jnp.zeros_like(sum_acc)
        cnt_acc[...] = jnp.zeros_like(cnt_acc)

    x = preds_ref[0].astype(jnp.float32)            # (C, T)
    lbl = label_ref[0]                              # (1, T) int32
    c, t = x.shape

    # numerically stable softmax pieces over the class (sublane) axis
    m = jnp.max(x, axis=0, keepdims=True)           # (1, T)
    e = jnp.exp(x - m)                              # (C, T)
    denom = jnp.sum(e, axis=0, keepdims=True)       # (1, T), >= 1 for real lanes

    # validity: ignore_label plus ragged/padded-lane mask (only when needed)
    if need_pix_mask:
        g = pl.program_id(1) * num_j + j            # global tile index
        pix = jax.lax.broadcasted_iota(jnp.int32, (1, t), 1) + g * hw_tile
        valid = jnp.logical_and(lbl != ignore_label, pix < hw)   # (1, T)
    else:
        valid = lbl != ignore_label                 # (1, T)

    # gather-first: one-hot pick from labels, reduce x and e over classes
    lbl_m = jnp.where(valid, lbl, -1)               # invalid lanes match no class
    cls = jax.lax.broadcasted_iota(jnp.int32, (c, t), 0)          # (C, T)
    pick = cls == lbl_m                                           # (C, T)
    picked_x = jnp.sum(jnp.where(pick, x, 0.0), axis=0, keepdims=True)  # (1, T)
    picked_e = jnp.sum(jnp.where(pick, e, 0.0), axis=0, keepdims=True)  # (1, T)

    # per-pixel focal term (all (1, T) from here on)
    logp_l = picked_x - m - jnp.log(denom)          # log softmax at label
    p_l = picked_e / denom                          # softmax prob at label (exact)
    q = 1.0 - p_l

    g_f = float(gamma)
    gi = int(g_f)
    if g_f == gi and 1 <= gi <= 8:                  # integer gamma -> VALU muls
        w = q
        for _ in range(gi - 1):
            w = w * q
    elif g_f == 0.0:
        w = jnp.ones_like(q)
    else:
        w = jnp.power(q, g_f)                       # O(T) EUP work only
    focal_l = w * logp_l                            # (1, T)

    # where-SELECT (not mask-multiply) so garbage padded lanes never propagate
    sum_acc[...] += jnp.where(valid, -focal_l, 0.0)
    cnt_acc[...] += valid.astype(jnp.float32)

    @pl.when(j == pl.num_programs(2) - 1)
    def _():
        sum_ref[...] = jnp.sum(sum_acc[...]).reshape(1, 1, 1)
        cnt_ref[...] = jnp.sum(cnt_acc[...]).reshape(1, 1, 1)


def focal_loss(preds, label, *, gamma=GAMMA, ignore_label=IGNORE_LABEL):
    """preds: (N, C, H, W) float (f32 or bf16); label: (N, H, W) int. Scalar loss."""
    n, c, h, w = preds.shape
    hw = h * w

    # Native-layout reshapes only -- no transpose / pad (no extra HBM pass).
    x = preds.reshape(n, c, hw)
    lbl = label.reshape(n, 1, hw).astype(jnp.int32)

    # --- tile sizing from the VMEM budget -----------------------------------
    in_bytes = jnp.dtype(preds.dtype).itemsize
    vmem_cap = _vmem_capacity_bytes()
    vmem_limit = int(max(min(vmem_cap - (16 << 20), 100 << 20), 32 << 20))
    budget = int(vmem_limit * 0.6)   # leave slack for compiler temporaries

    # per-lane bytes: preds double-buffer + (C,T) f32 kernel temporaries
    #                 + label double-buffer + scratch + (1,T) temporaries
    bytes_per_lane = 2 * c * in_bytes + 3 * c * 4 + 2 * 4 + 2 * 4 + 64
    tile = max(_round_down(budget // bytes_per_lane, 128), MIN_HW_TILE)
    hw_tile = min(tile, MAX_HW_TILE, _round_up(hw, 128))   # always 128-multiple

    num_tiles = pl.cdiv(hw, hw_tile)
    n_split = 2 if num_tiles >= 2 else 1     # feed v7x's second TensorCore
    num_j = pl.cdiv(num_tiles, n_split)
    need_pix_mask = (n_split * num_j * hw_tile != hw)
    last_tile = num_tiles - 1

    def _idx_map(nn, s, j):
        # clamp so split-padding tiles never issue out-of-range DMA;
        # their lanes are zeroed by the pix < hw mask in the kernel.
        return (nn, 0, jnp.minimum(s * num_j + j, last_tile))

    def _lbl_idx_map(nn, s, j):
        return (nn, 0, jnp.minimum(s * num_j + j, last_tile))

    kernel = functools.partial(
        _focal_loss_kernel,
        gamma=gamma, ignore_label=ignore_label,
        hw=hw, hw_tile=hw_tile, num_j=num_j, need_pix_mask=need_pix_mask,
    )

    loss_sum, valid_cnt = pl.pallas_call(
        kernel,
        out_shape=(
            jax.ShapeDtypeStruct((n, n_split, 1), jnp.float32),
            jax.ShapeDtypeStruct((n, n_split, 1), jnp.float32),
        ),
        grid_spec=pltpu.PrefetchScalarGridSpec(
            num_scalar_prefetch=0,
            grid=(n, n_split, num_j),
            in_specs=[
                pl.BlockSpec((1, c, hw_tile), _idx_map),
                pl.BlockSpec((1, 1, hw_tile), _lbl_idx_map),
            ],
            out_specs=(
                pl.BlockSpec((1, 1, 1), lambda nn, s, j: (nn, s, 0)),
                pl.BlockSpec((1, 1, 1), lambda nn, s, j: (nn, s, 0)),
            ),
            scratch_shapes=[
                pltpu.VMEM((1, hw_tile), jnp.float32),
                pltpu.VMEM((1, hw_tile), jnp.float32),
            ],
        ),
        compiler_params=pltpu.CompilerParams(
            dimension_semantics=("parallel", "parallel", "arbitrary"),
            vmem_limit_bytes=vmem_limit,
        ),
    )(x, lbl)

    # NLLLoss(reduction='mean', no weights): sum over valid / number of valid.
    # (If every pixel is ignore_label this divides by zero -- same as PyTorch.)
    total = jnp.sum(loss_sum)
    count = jnp.sum(valid_cnt)
    return (total / count).astype(jnp.float32)


def _reference_focal_loss(preds, label, gamma=GAMMA, ignore_label=IGNORE_LABEL):
    # pure-JAX reference mirroring the PyTorch forward
    p = jax.nn.softmax(preds, axis=1)
    logp = jnp.log(p)
    focal = jnp.power(1.0 - p, gamma) * logp              # (N, C, H, W)
    n, c, h, w = preds.shape
    focal = jnp.transpose(focal, (0, 2, 3, 1)).reshape(-1, c)
    lbl = label.reshape(-1)
    valid = lbl != ignore_label
    safe_lbl = jnp.where(valid, lbl, 0)
    picked = jnp.take_along_axis(focal, safe_lbl[:, None], axis=1)[:, 0]
    loss = -jnp.sum(jnp.where(valid, picked, 0.0)) / jnp.sum(valid)
    return loss


if __name__ == "__main__":
    key = jax.random.PRNGKey(0)
    k1, k2, k3 = jax.random.split(key, 3)

    N, C, H, W = 2, 4, 16, 16
    preds = jax.random.normal(k1, (N, C, H, W), dtype=jnp.float32)
    label = jax.random.randint(k2, (N, H, W), 0, C, dtype=jnp.int32)
    # sprinkle in some ignore_label pixels to exercise masking
    ignore_mask = jax.random.bernoulli(k3, 0.1, (N, H, W))
    label = jnp.where(ignore_mask, IGNORE_LABEL, label)

    loss = focal_loss(preds, label)
    jax.block_until_ready(loss)

    ref = _reference_focal_loss(preds, label)
    assert jnp.allclose(loss, ref, atol=1e-5, rtol=1e-5), (loss, ref)

    print("KERNEL_OK")
</pallas_src>

<mosaic_0001>
module attributes {stable_mosaic.version = 11 : i64} {
  func.func @_focal_loss_kernel(%arg0: i32, %arg1: i32, %arg2: i32, %arg3: memref<1x4x256xf32, #tpu.memory_space<vmem>>, %arg4: memref<1x1x256xi32, #tpu.memory_space<vmem>>, %arg5: memref<1x1x1xf32, #tpu.memory_space<vmem>>, %arg6: memref<1x1x1xf32, #tpu.memory_space<vmem>>, %arg7: memref<1x256xf32, #tpu.memory_space<vmem>>, %arg8: memref<1x256xf32, #tpu.memory_space<vmem>>) attributes {dimension_semantics = [#tpu.dimension_semantics<parallel>, #tpu.dimension_semantics<parallel>, #tpu.dimension_semantics<arbitrary>], iteration_bounds = array<i64: 2, 1, 1>, scalar_prefetch = 0 : i64, scratch_operands = 2 : i64, tpu.core_type = #tpu.core_type<tc>, window_params = [{transform_indices = @transform_0, window_bounds = array<i64: 1, 4, 256>}, {transform_indices = @transform_1, window_bounds = array<i64: 1, 1, 256>}, {transform_indices = @transform_2, window_bounds = array<i64: 1, 1, 1>}, {transform_indices = @transform_3, window_bounds = array<i64: 1, 1, 1>}]} {
    %c0_i32 = arith.constant 0 : i32
    %0 = arith.cmpi eq, %arg2, %c0_i32 : i32
    %1 = arith.extui %0 : i1 to i32
    %c0_i32_0 = arith.constant 0 : i32
    %2 = arith.cmpi ne, %1, %c0_i32_0 : i32
    scf.if %2 {
      %cst_24 = arith.constant 0.000000e+00 : f32
      %52 = vector.broadcast %cst_24 : f32 to vector<1x256xf32>
      %c0_25 = arith.constant 0 : index
      %c0_26 = arith.constant 0 : index
      %53 = vector.load %arg7[%c0_25, %c0_26] : memref<1x256xf32, #tpu.memory_space<vmem>>, vector<1x256xf32>
      tpu.vector_store %arg7[%c0_25, %c0_26], %52 {strides = array<i32>} : memref<1x256xf32, #tpu.memory_space<vmem>>, vector<1x256xf32>,
      %cst_27 = arith.constant 0.000000e+00 : f32
      %54 = vector.broadcast %cst_27 : f32 to vector<1x256xf32>
      %c0_28 = arith.constant 0 : index
      %c0_29 = arith.constant 0 : index
      %55 = vector.load %arg8[%c0_28, %c0_29] : memref<1x256xf32, #tpu.memory_space<vmem>>, vector<1x256xf32>
      tpu.vector_store %arg8[%c0_28, %c0_29], %54 {strides = array<i32>} : memref<1x256xf32, #tpu.memory_space<vmem>>, vector<1x256xf32>,
    } else {
    }
    %c0 = arith.constant 0 : index
    %c0_1 = arith.constant 0 : index
    %c0_2 = arith.constant 0 : index
    %3 = vector.load %arg3[%c0, %c0_1, %c0_2] : memref<1x4x256xf32, #tpu.memory_space<vmem>>, vector<1x4x256xf32>
    %4 = vector.shape_cast %3 : vector<1x4x256xf32> to vector<4x256xf32>
    %c0_3 = arith.constant 0 : index
    %c0_4 = arith.constant 0 : index
    %c0_5 = arith.constant 0 : index
    %5 = vector.load %arg4[%c0_3, %c0_4, %c0_5] : memref<1x1x256xi32, #tpu.memory_space<vmem>>, vector<1x1x256xi32>
    %6 = vector.shape_cast %5 : vector<1x1x256xi32> to vector<1x256xi32>
    %cst = arith.constant dense<0xFF800000> : vector<256xf32>
    %7 = vector.multi_reduction <maximumf>, %4, %cst [0] : vector<4x256xf32> to vector<256xf32>
    %8 = vector.shape_cast %7 : vector<256xf32> to vector<1x256xf32>
    %9 = vector.broadcast %8 : vector<1x256xf32> to vector<4x256xf32>
    %10 = arith.subf %4, %9 : vector<4x256xf32>
    %11 = math.exp %10 : vector<4x256xf32>
    %cst_6 = arith.constant dense<0.000000e+00> : vector<256xf32>
    %12 = vector.multi_reduction <add>, %11, %cst_6 [0] : vector<4x256xf32> to vector<256xf32>
    %13 = vector.shape_cast %12 : vector<256xf32> to vector<1x256xf32>
    %c255_i32 = arith.constant 255 : i32
    %14 = vector.broadcast %c255_i32 : i32 to vector<1x256xi32>
    %15 = arith.cmpi ne, %6, %14 : vector<1x256xi32>
    %c-1_i32 = arith.constant -1 : i32
    %16 = vector.broadcast %c-1_i32 : i32 to vector<1x256xi32>
    %17 = arith.select %15, %6, %16 : vector<1x256xi1>, vector<1x256xi32>
    %18 = tpu.iota {dimensions = array<i32: 0>} : vector<4x256xi32>
    %19 = vector.broadcast %17 : vector<1x256xi32> to vector<4x256xi32>
    %20 = arith.cmpi eq, %18, %19 : vector<4x256xi32>
    %cst_7 = arith.constant 0.000000e+00 : f32
    %21 = vector.broadcast %cst_7 : f32 to vector<4x256xf32>
    %22 = arith.select %20, %4, %21 : vector<4x256xi1>, vector<4x256xf32>
    %cst_8 = arith.constant dense<0.000000e+00> : vector<256xf32>
    %23 = vector.multi_reduction <add>, %22, %cst_8 [0] : vector<4x256xf32> to vector<256xf32>
    %24 = vector.shape_cast %23 : vector<256xf32> to vector<1x256xf32>
    %cst_9 = arith.constant 0.000000e+00 : f32
    %25 = vector.broadcast %cst_9 : f32 to vector<4x256xf32>
    %26 = arith.select %20, %11, %25 : vector<4x256xi1>, vector<4x256xf32>
    %cst_10 = arith.constant dense<0.000000e+00> : vector<256xf32>
    %27 = vector.multi_reduction <add>, %26, %cst_10 [0] : vector<4x256xf32> to vector<256xf32>
    %28 = vector.shape_cast %27 : vector<256xf32> to vector<1x256xf32>
    %29 = arith.subf %24, %8 : vector<1x256xf32>
    %30 = math.log %13 : vector<1x256xf32>
    %31 = arith.subf %29, %30 : vector<1x256xf32>
    %32 = arith.divf %28, %13 : vector<1x256xf32>
    %cst_11 = arith.constant 1.000000e+00 : f32
    %33 = vector.broadcast %cst_11 : f32 to vector<1x256xf32>
    %34 = arith.subf %33, %32 : vector<1x256xf32>
    %35 = arith.mulf %34, %34 : vector<1x256xf32>
    %36 = arith.mulf %35, %31 : vector<1x256xf32>
    %c0_12 = arith.constant 0 : index
    %c0_13 = arith.constant 0 : index
    %37 = vector.load %arg7[%c0_12, %c0_13] : memref<1x256xf32, #tpu.memory_space<vmem>>, vector<1x256xf32>
    %cst_14 = arith.constant 0.000000e+00 : f32
    %38 = vector.broadcast %cst_14 : f32 to vector<1x256xf32>
    %39 = arith.subf %38, %36 : vector<1x256xf32>
    %cst_15 = arith.constant 0.000000e+00 : f32
    %40 = vector.broadcast %cst_15 : f32 to vector<1x256xf32>
    %41 = arith.select %15, %39, %40 : vector<1x256xi1>, vector<1x256xf32>
    %42 = arith.addf %37, %41 : vector<1x256xf32>
    %c0_16 = arith.constant 0 : index
    %c0_17 = arith.constant 0 : index
    %43 = vector.load %arg7[%c0_16, %c0_17] : memref<1x256xf32, #tpu.memory_space<vmem>>, vector<1x256xf32>
    tpu.vector_store %arg7[%c0_16, %c0_17], %42 {strides = array<i32>} : memref<1x256xf32, #tpu.memory_space<vmem>>, vector<1x256xf32>,
    %c0_18 = arith.constant 0 : index
    %c0_19 = arith.constant 0 : index
    %44 = vector.load %arg8[%c0_18, %c0_19] : memref<1x256xf32, #tpu.memory_space<vmem>>, vector<1x256xf32>
    %45 = arith.extui %15 : vector<1x256xi1> to vector<1x256xi32>
    %46 = arith.sitofp %45 : vector<1x256xi32> to vector<1x256xf32>
    %47 = arith.addf %44, %46 : vector<1x256xf32>
    %c0_20 = arith.constant 0 : index
    %c0_21 = arith.constant 0 : index
    %48 = vector.load %arg8[%c0_20, %c0_21] : memref<1x256xf32, #tpu.memory_space<vmem>>, vector<1x256xf32>
    tpu.vector_store %arg8[%c0_20, %c0_21], %47 {strides = array<i32>} : memref<1x256xf32, #tpu.memory_space<vmem>>, vector<1x256xf32>,
    %c0_i32_22 = arith.constant 0 : i32
    %49 = arith.cmpi eq, %arg2, %c0_i32_22 : i32
    %50 = arith.extui %49 : i1 to i32
    %c0_i32_23 = arith.constant 0 : i32
    %51 = arith.cmpi ne, %50, %c0_i32_23 : i32
    scf.if %51 {
      %c0_24 = arith.constant 0 : index
      %c0_25 = arith.constant 0 : index
      %52 = vector.load %arg7[%c0_24, %c0_25] : memref<1x256xf32, #tpu.memory_space<vmem>>, vector<1x256xf32>
      %53 = vector.shape_cast %52 : vector<1x256xf32> to vector<1x1x256xf32>
      %cst_26 = arith.constant dense<0.000000e+00> : vector<1xf32>
      %54 = vector.multi_reduction <add>, %53, %cst_26 [1, 2] : vector<1x1x256xf32> to vector<1xf32>
      %55 = vector.shape_cast %54 : vector<1xf32> to vector<1x1x1xf32>
      %56 = vector.extract %55[0, 0, 0] : f32 from vector<1x1x1xf32>
      %57 = vector.broadcast %56 : f32 to vector<1x1x1xf32>
      %c0_27 = arith.constant 0 : index
      %c0_28 = arith.constant 0 : index
      %c0_29 = arith.constant 0 : index
      %58 = vector.load %arg5[%c0_27, %c0_28, %c0_29] : memref<1x1x1xf32, #tpu.memory_space<vmem>>, vector<1x1x1xf32>
      tpu.vector_store %arg5[%c0_27, %c0_28, %c0_29], %57 {strides = array<i32>} : memref<1x1x1xf32, #tpu.memory_space<vmem>>, vector<1x1x1xf32>,
      %c0_30 = arith.constant 0 : index
      %c0_31 = arith.constant 0 : index
      %59 = vector.load %arg8[%c0_30, %c0_31] : memref<1x256xf32, #tpu.memory_space<vmem>>, vector<1x256xf32>
      %60 = vector.shape_cast %59 : vector<1x256xf32> to vector<1x1x256xf32>
      %cst_32 = arith.constant dense<0.000000e+00> : vector<1xf32>
      %61 = vector.multi_reduction <add>, %60, %cst_32 [1, 2] : vector<1x1x256xf32> to vector<1xf32>
      %62 = vector.shape_cast %61 : vector<1xf32> to vector<1x1x1xf32>
      %63 = vector.extract %62[0, 0, 0] : f32 from vector<1x1x1xf32>
      %64 = vector.broadcast %63 : f32 to vector<1x1x1xf32>
      %c0_33 = arith.constant 0 : index
      %c0_34 = arith.constant 0 : index
      %c0_35 = arith.constant 0 : index
      %65 = vector.load %arg6[%c0_33, %c0_34, %c0_35] : memref<1x1x1xf32, #tpu.memory_space<vmem>>, vector<1x1x1xf32>
      tpu.vector_store %arg6[%c0_33, %c0_34, %c0_35], %64 {strides = array<i32>} : memref<1x1x1xf32, #tpu.memory_space<vmem>>, vector<1x1x1xf32>,
    } else {
    }
    return
  }
  func.func @transform_0(%arg0: i32, %arg1: i32, %arg2: i32) -> (i32, i32, i32) {
    %c1_i32 = arith.constant 1 : i32
    %0 = arith.muli %arg1, %c1_i32 : i32
    %1 = arith.addi %0, %arg2 : i32
    %c0_i32 = arith.constant 0 : i32
    %2 = arith.minsi %1, %c0_i32 : i32
    %c0_i32_0 = arith.constant 0 : i32
    %c0_i32_1 = arith.constant 0 : i32
    return %arg0, %c0_i32_0, %2 : i32, i32, i32
  }
  func.func @transform_1(%arg0: i32, %arg1: i32, %arg2: i32) -> (i32, i32, i32) {
    %c1_i32 = arith.constant 1 : i32
    %0 = arith.muli %arg1, %c1_i32 : i32
    %1 = arith.addi %0, %arg2 : i32
    %c0_i32 = arith.constant 0 : i32
    %2 = arith.minsi %1, %c0_i32 : i32
    %c0_i32_0 = arith.constant 0 : i32
    %c0_i32_1 = arith.constant 0 : i32
    return %arg0, %c0_i32_0, %2 : i32, i32, i32
  }
  func.func @transform_2(%arg0: i32, %arg1: i32, %arg2: i32) -> (i32, i32, i32) {
    %c0_i32 = arith.constant 0 : i32
    %c0_i32_0 = arith.constant 0 : i32
    return %arg0, %arg1, %c0_i32 : i32, i32, i32
  }
  func.func @transform_3(%arg0: i32, %arg1: i32, %arg2: i32) -> (i32, i32, i32) {
    %c0_i32 = arith.constant 0 : i32
    %c0_i32_0 = arith.constant 0 : i32
    return %arg0, %arg1, %c0_i32 : i32, i32, i32
  }
}

</mosaic_0001>

<llo_original>
// kernel: tpu_custom_call.1
$region0: #{tpu_custom_call.1}
  #allocation0 [shape = 'u32[]', space=smem, size = 0x4, offset = 0x4, fixed_abs, tag = 'smem constant byte address 0x4 - core index']
  #allocation1 [shape = 'u32[144,128]{1,0:T(1,128)}', space=vmem, size = 0x12000, scoped, tag = 'internal scratch']
  #allocation2 [shape = 'f32[1,256]{1,0:T(1,128)}', space=vmem, size = 0x400, scoped, tag = 'scratch operand']
  #allocation3 [shape = 'f32[1,256]{1,0:T(1,128)}', space=vmem, size = 0x400, scoped, tag = 'scratch operand']
  %s0 = inlined_call_operand.hbm [shape: f32[2,4,256], index: 0, kind: input, shape index: {}]
  %s1 = inlined_call_operand.hbm [shape: s32[2,1,256], index: 1, kind: input, shape index: {}]
  %s2 = inlined_call_operand.vmem [shape: f32[2,1,1], index: 2, kind: output, shape index: {0}]
  %s3 = inlined_call_operand.vmem [shape: f32[2,1,1], index: 3, kind: output, shape index: {1}]
  %4 = xla_tuple %s2, %s3
  %s5 = sld [smem:[#allocation0]]
  $region65: #{tpu_custom_call.1} parent=0
    _
  %s7 = ssub.s32 1, %s5
  %s8 = scalar_select 0, %s7, %s5
  $region1: #{tpu_custom_call.1} parent=0
    #allocation4 [shape = 'u8[8192]{0}', space=vmem, size = 0x2000, scoped, tag = 'input window, operand 0']
    #allocation5 [shape = 's32[2]{0}', space=sflag, size = 0x8, scoped, tag = 'scoped memory for tpu_custom_call.1']
    #allocation6 [shape = 'u8[2048]{0}', space=vmem, size = 0x800, scoped, tag = 'input window, operand 1']
    #allocation7 [shape = 's32[2]{0}', space=sflag, size = 0x8, scoped, tag = 'scoped memory for tpu_custom_call.1']
    %9 = vsyncpa [#allocation5], 0
    %s10 = scalar_lea.sflag [#allocation5], 1
    %11 = vsyncpa %s10, 0
    %12 = vsyncpa [#allocation7], 0
    %s13 = scalar_lea.sflag [#allocation7], 1
    %14 = vsyncpa %s13, 0
    loop: start=0, step=1, limit=4
    $region2: #{tpu_custom_call.1} parent=1 // loop_pre_header
      _
    $region3: #{tpu_custom_call.1} parent=1 // loop_header
      %s16 = sphi 0, %s20
      %p17 = scmp.ge.s32.totalorder %s16, 4
      %s23 = sphi 0, %s42
      %s24 = sphi 0, %s38
      %s25 = sphi 0, %s34
      %s26 = sphi 0, %s23
      %s27 = sphi 0, %s24
      %s28 = sphi 0, %s25
      %s29 = sphi 0, %s26
      %s30 = sphi 0, %s27
      %s31 = sphi 0, %s28
      %s53 = sphi 0, %s55
      %s56 = sphi 0, %s53
      %s57 = sphi 0, %s56
      %s73 = sphi 0, %s57
      %s87 = sphi 0, %s89
      %s90 = sphi 0, %s87
      %s91 = sphi 0, %s90
      %s107 = sphi 0, %s91
      %s115 = sphi 0, %s117
      %s118 = sphi 0, %s115
      %s119 = sphi 0, %s118
      %s135 = sphi 0, %s119
      %s143 = sphi 0, %s145
      %s146 = sphi 0, %s143
      %s147 = sphi 0, %s146
      %s163 = sphi 0, %s147
    $region4: #{tpu_custom_call.1} parent=1 // loop_header_branch
      %19 = sbr.rel (%p17) target = $region8
    $region5: #{tpu_custom_call.1} parent=1 // loop_body
      %s21 = ssub.s32 %s16, 1
      %s22 = ssub.s32 %s16, 2
      %s32 = sadd.s32 1, %s25
      %p33 = scmp.ge.s32.totalorder %s32, 1
      %s34 = scalar_select %p33, 0, %s32
      %s35 = sadd.s32 1, %s24
      %s36 = scalar_select %p33, %s35, %s24
      %p37 = scmp.ge.s32.totalorder %s36, 1
      %s38 = scalar_select %p37, 0, %s36
      %s39 = sadd.s32 1, %s23
      %s40 = scalar_select %p37, %s39, %s23
      %p41 = scmp.ge.s32.totalorder %s40, 2
      %s42 = scalar_select %p41, 0, %s40
      %s43 = sadd.s32 %s24, %s25
      %p44 = scmp.lt.s32.totalorder %s43, 0
      %s45 = scalar_select %p44, %s43, 0
      %s46 = sadd.s32 %s38, %s34
      %p47 = scmp.lt.s32.totalorder %s46, 0
      %s48 = scalar_select %p47, %s46, 0
      %s49 = ssub.s32 %s23, %s42
      %s50 = ssub.s32 %s45, %s48
      %s51 = sor.u32 %s49, %s50
      %p52 = scmp.eq.s32.totalorder %s51, 0
      %s54 = sadd.s32 %s53, 1
      %s55 = scalar_select %p52, %s53, %s54
      %p58 = pneg %p52
      %p59 = scmp.eq.s32.totalorder %s16, 1
      %p60 = por %p58, %p59
      %p61 = scmp.ne.s32.totalorder %s53, %s56
      %p62 = scmp.eq.s32.totalorder %s16, 0
      %p63 = por %p61, %p62
      %p64 = scmp.ne.s32.totalorder %s53, %s56
      %p65 = scmp.eq.s32.totalorder %s21, 1
      %p66 = por %p64, %p65
      %p67 = scmp.ne.s32.totalorder %s56, %s57
      %p68 = scmp.eq.s32.totalorder %s21, 0
      %p69 = por %p67, %p68
      %p70 = scmp.ne.s32.totalorder %s56, %s57
      %p71 = scmp.eq.s32.totalorder %s22, 1
      %p72 = por %p70, %p71
      %p74 = scmp.ne.s32.totalorder %s57, %s73
      %p75 = scmp.eq.s32.totalorder %s22, 0
      %p76 = por %p74, %p75
      %s77 = sadd.s32 %s24, %s25
      %p78 = scmp.lt.s32.totalorder %s77, 0
      %s79 = scalar_select %p78, %s77, 0
      %s80 = sadd.s32 %s38, %s34
      %p81 = scmp.lt.s32.totalorder %s80, 0
      %s82 = scalar_select %p81, %s80, 0
      %s83 = ssub.s32 %s23, %s42
      %s84 = ssub.s32 %s79, %s82
      %s85 = sor.u32 %s83, %s84
      %p86 = scmp.eq.s32.totalorder %s85, 0
      %s88 = sadd.s32 %s87, 1
      %s89 = scalar_select %p86, %s87, %s88
      %p92 = pneg %p86
      %p93 = scmp.eq.s32.totalorder %s16, 1
      %p94 = por %p92, %p93
      %p95 = scmp.ne.s32.totalorder %s87, %s90
      %p96 = scmp.eq.s32.totalorder %s16, 0
      %p97 = por %p95, %p96
      %p98 = scmp.ne.s32.totalorder %s87, %s90
      %p99 = scmp.eq.s32.totalorder %s21, 1
      %p100 = por %p98, %p99
      %p101 = scmp.ne.s32.totalorder %s90, %s91
      %p102 = scmp.eq.s32.totalorder %s21, 0
      %p103 = por %p101, %p102
      %p104 = scmp.ne.s32.totalorder %s90, %s91
      %p105 = scmp.eq.s32.totalorder %s22, 1
      %p106 = por %p104, %p105
      %p108 = scmp.ne.s32.totalorder %s91, %s107
      %p109 = scmp.eq.s32.totalorder %s22, 0
      %p110 = por %p108, %p109
      %s111 = ssub.s32 %s23, %s42
      %s112 = ssub.s32 %s24, %s38
      %s113 = sor.u32 %s111, %s112
      %p114 = scmp.eq.s32.totalorder %s113, 0
      %s116 = sadd.s32 %s115, 1
      %s117 = scalar_select %p114, %s115, %s116
      %p120 = pneg %p114
      %p121 = scmp.eq.s32.totalorder %s16, 1
      %p122 = por %p120, %p121
      %p123 = scmp.ne.s32.totalorder %s115, %s118
      %p124 = scmp.eq.s32.totalorder %s16, 0
      %p125 = por %p123, %p124
      %p126 = scmp.ne.s32.totalorder %s115, %s118
      %p127 = scmp.eq.s32.totalorder %s21, 1
      %p128 = por %p126, %p127
      %p129 = scmp.ne.s32.totalorder %s118, %s119
      %p130 = scmp.eq.s32.totalorder %s21, 0
      %p131 = por %p129, %p130
      %p132 = scmp.ne.s32.totalorder %s118, %s119
      %p133 = scmp.eq.s32.totalorder %s22, 1
      %p134 = por %p132, %p133
      %p136 = scmp.ne.s32.totalorder %s119, %s135
      %p137 = scmp.eq.s32.totalorder %s22, 0
      %p138 = por %p136, %p137
      %s139 = ssub.s32 %s23, %s42
      %s140 = ssub.s32 %s24, %s38
      %s141 = sor.u32 %s139, %s140
      %p142 = scmp.eq.s32.totalorder %s141, 0
      %s144 = sadd.s32 %s143, 1
      %s145 = scalar_select %p142, %s143, %s144
      %p148 = pneg %p142
      %p149 = scmp.eq.s32.totalorder %s16, 1
      %p150 = por %p148, %p149
      %p151 = scmp.ne.s32.totalorder %s143, %s146
      %p152 = scmp.eq.s32.totalorder %s16, 0
      %p153 = por %p151, %p152
      %p154 = scmp.ne.s32.totalorder %s143, %s146
      %p155 = scmp.eq.s32.totalorder %s21, 1
      %p156 = por %p154, %p155
      %p157 = scmp.ne.s32.totalorder %s146, %s147
      %p158 = scmp.eq.s32.totalorder %s21, 0
      %p159 = por %p157, %p158
      %p160 = scmp.ne.s32.totalorder %s146, %s147
      %p161 = scmp.eq.s32.totalorder %s22, 1
      %p162 = por %p160, %p161
      %p164 = scmp.ne.s32.totalorder %s147, %s163
      %p165 = scmp.eq.s32.totalorder %s22, 0
      %p166 = por %p164, %p165
      %p167 = scmp.le.s32.totalorder 1, %s16
      %p168 = scmp.lt.s32.totalorder %s16, 3
      %p169 = pnand %p167, %p168
      %p170 = pneg %p169
      // Predicated region
      $region9: #{tpu_custom_call.1} parent=5 // pred_check
        _
      $region10: #{tpu_custom_call.1} parent=5 // pred_check_branch
        %172 = sbr.rel (%p169) target = $region12
      $region11: #{tpu_custom_call.1} parent=5 // pred_region
        %s173 = ssub.s32 %s16, 1
      $region12: #{tpu_custom_call.1} parent=5 // pred_fallthru
        _
      %p174 = scmp.lt.s32.totalorder %s16, 2
      // Predicated region
      $region13: #{tpu_custom_call.1} parent=5 // pred_check
        %p175 = pneg %p174
      $region14: #{tpu_custom_call.1} parent=5 // pred_check_branch
        %177 = sbr.rel (%p175) target = $region16
      $region15: #{tpu_custom_call.1} parent=5 // pred_region
        // Predicated region
        $region17: #{tpu_custom_call.1} parent=15 // pred_check
          %p178 = pneg %p63
        $region18: #{tpu_custom_call.1} parent=15 // pred_check_branch
          %180 = sbr.rel (%p178) target = $region20
        $region19: #{tpu_custom_call.1} parent=15 // pred_region
          %s181 = sand.u32 %s53, 1
          %s182 = scalar_lea.sflag [#allocation5], %s181
          %s183 = sand.u32 %s53, 1
          %s184 = smul.addr %s183, 8
          %s185 = scalar_lea.vmem [#allocation4], %s184
          %s186 = sadd.s32 %s24, %s25
          %p187 = scmp.lt.s32.totalorder %s186, 0
          %s188 = scalar_select %p187, %s186, 0
          %s189 = smul.u32 2, %s188
          %s191 = ssub.s32 128, 128
          %192 = vsyncadd %s182, %s191
          %s193 = smul.addr %s23, 2
          %s194 = sadd.s32 %s189, %s193
          %s195 = smul.addr %s194, 64
          %s196 = scalar_lea.hbm %s0, %s195
          %s198 = sshll.u32 %s185, 4
          %s199 = int_to_ptr.vmem [resolvable:$true] %s198
          %201 = dma.hbm_to_vmem [thread:$0]  %s196, 128, %s199, %s182
        $region20: #{tpu_custom_call.1} parent=15 // pred_fallthru
          _
        // Predicated region
        $region21: #{tpu_custom_call.1} parent=15 // pred_check
          %p202 = pneg %p97
        $region22: #{tpu_custom_call.1} parent=15 // pred_check_branch
          %204 = sbr.rel (%p202) target = $region24
        $region23: #{tpu_custom_call.1} parent=15 // pred_region
          %s205 = sand.u32 %s87, 1
          %s206 = scalar_lea.sflag [#allocation7], %s205
          %s207 = sand.u32 %s87, 1
          %s208 = smul.addr %s207, 2
          %s209 = scalar_lea.vmem [#allocation6], %s208
          %s210 = sadd.s32 %s24, %s25
          %p211 = scmp.lt.s32.totalorder %s210, 0
          %s212 = scalar_select %p211, %s210, 0
          %s213 = smul.u32 2, %s212
          %s215 = ssub.s32 32, 32
          %216 = vsyncadd %s206, %s215
          %s217 = smul.addr %s23, 2
          %s218 = sadd.s32 %s213, %s217
          %s219 = smul.addr %s218, 16
          %s220 = scalar_lea.hbm %s1, %s219
          %s222 = sshll.u32 %s209, 4
          %s223 = int_to_ptr.vmem [resolvable:$true] %s222
          %225 = dma.hbm_to_vmem [thread:$0]  %s220, 32, %s223, %s206
        $region24: #{tpu_custom_call.1} parent=15 // pred_fallthru
          _
      $region16: #{tpu_custom_call.1} parent=5 // pred_fallthru
        _
      %p226 = scmp.le.s32.totalorder 1, %s16
      %p227 = scmp.lt.s32.totalorder %s16, 3
      %p228 = pnand %p226, %p227
      %p229 = pneg %p228
      // Predicated region
      $region25: #{tpu_custom_call.1} parent=5 // pred_check
        _
      $region26: #{tpu_custom_call.1} parent=5 // pred_check_branch
        %231 = sbr.rel (%p228) target = $region28
      $region27: #{tpu_custom_call.1} parent=5 // pred_region
        %s232 = ssub.s32 %s16, 1
        %s233 = sand.u32 %s56, 1
        %s234 = scalar_lea.sflag [#allocation5], %s233
        %s235 = sand.u32 %s56, 1
        %s236 = smul.addr %s235, 8
        %s237 = scalar_lea.vmem [#allocation4], %s236
        // Predicated region
        $region29: #{tpu_custom_call.1} parent=27 // pred_check
          %p238 = pneg %p69
        $region30: #{tpu_custom_call.1} parent=27 // pred_check_branch
          %240 = sbr.rel (%p238) target = $region32
        $region31: #{tpu_custom_call.1} parent=27 // pred_region
          %241 = dma.done %s234, 128
        $region32: #{tpu_custom_call.1} parent=27 // pred_fallthru
          _
        %s242 = sand.u32 %s90, 1
        %s243 = scalar_lea.sflag [#allocation7], %s242
        %s244 = sand.u32 %s90, 1
        %s245 = smul.addr %s244, 2
        %s246 = scalar_lea.vmem [#allocation6], %s245
        // Predicated region
        $region33: #{tpu_custom_call.1} parent=27 // pred_check
          %p247 = pneg %p103
        $region34: #{tpu_custom_call.1} parent=27 // pred_check_branch
          %249 = sbr.rel (%p247) target = $region36
        $region35: #{tpu_custom_call.1} parent=27 // pred_region
          %250 = dma.done %s243, 32
        $region36: #{tpu_custom_call.1} parent=27 // pred_fallthru
          _
        %s251 = sand.u32 %s56, 1
        %s252 = scalar_lea.sflag [#allocation5], %s251
        %s253 = sand.u32 %s56, 1
        %s254 = smul.addr %s253, 8
        %s255 = scalar_lea.vmem [#allocation4], %s254
        %p256 = pneg %p69
        %p257 = pneg %p66
        %s258 = sand.u32 %s90, 1
        %s259 = scalar_lea.sflag [#allocation7], %s258
        %s260 = sand.u32 %s90, 1
        %s261 = smul.addr %s260, 2
        %s262 = scalar_lea.vmem [#allocation6], %s261
        %p263 = pneg %p103
        %p264 = pneg %p100
        %p265 = pneg %p131
        %p266 = pneg %p128
        %p267 = scmp.lt.s32.totalorder %s26, 1
        %s268 = scalar_select %p267, %s26, 1
        %p269 = scmp.lt.s32.totalorder %s27, 0
        %s270 = scalar_select %p269, %s27, 0
        %s271 = sadd.s32 %s270, %s268
        %s272 = scalar_lea.vmem %s2, %s271
        %p273 = pneg %p159
        %p274 = pneg %p156
        %p275 = scmp.lt.s32.totalorder %s26, 1
        %s276 = scalar_select %p275, %s26, 1
        %p277 = scmp.lt.s32.totalorder %s27, 0
        %s278 = scalar_select %p277, %s27, 0
        %s279 = sadd.s32 %s278, %s276
        %s280 = scalar_lea.vmem %s3, %s279
        %s281 = sadd.s32 %s27, %s28
        %p282 = scmp.lt.s32.totalorder %s281, 0
        %s283 = scalar_select %p282, %s281, 0
        %s284 = smul.u32 2, %s283
        %s285 = sadd.s32 %s27, %s28
        %p286 = scmp.lt.s32.totalorder %s285, 0
        %s287 = scalar_select %p286, %s285, 0
        %s288 = smul.u32 2, %s287
        %p289 = scmp.lt.s32.totalorder %s26, 1
        %s290 = scalar_select %p289, %s26, 1
        %p291 = scmp.lt.s32.totalorder %s27, 0
        %s292 = scalar_select %p291, %s27, 0
        %s293 = sadd.s32 %s292, %s290
        %s294 = scalar_lea.vmem %s2, %s293
        %p295 = scmp.lt.s32.totalorder %s26, 1
        %s296 = scalar_select %p295, %s26, 1
        %p297 = scmp.lt.s32.totalorder %s27, 0
        %s298 = scalar_select %p297, %s27, 0
        %s299 = sadd.s32 %s298, %s296
        %s300 = scalar_lea.vmem %s3, %s299
        %p301 = scmp.eq.s32.totalorder %s28, 0
        // Predicated region
        $region37: #{tpu_custom_call.1} parent=27 // pred_check
          %p302 = pneg %p301
        $region38: #{tpu_custom_call.1} parent=27 // pred_check_branch
          %304 = sbr.rel (%p302) target = $region40
        $region39: #{tpu_custom_call.1} parent=27 // pred_region
          %v305 = vlaneseq
          %vm306 = vcmp.ge.s32.totalorder %v305, 0
          %vm307 = vcmp.lt.s32.totalorder %v305, 256
          %vm308 = vmand %vm306, %vm307
          %309 = vst.msk [vmem:[#allocation2] sm:$0x3] %vm308, 0.0
          %310 = vst.msk [vmem:[#allocation3] sm:$0x3] %vm308, 0.0
        $region40: #{tpu_custom_call.1} parent=27 // pred_fallthru
          _
        %v311 = vld [vmem:[%s237] sm:$0xff]
        %v312 = vld [vmem:[%s246] sm:$0x3]
        %v314 = vcombine.high %v311, %v311
        %vm316 = vcmask 1043456
        %v317 = vsel %vm316, %v311, -inf
        %v318 = vrot.slane %v317, 4
        %v319 = vmax.f32 %v317, %v318
        %v320 = vrot.slane %v319, 2
        %v321 = vmax.f32 %v319, %v320
        %v322 = vrot.slane %v321, 1
        %v323 = vmax.f32 %v321, %v322
        %v324 = vsel %vm316, %v314, -inf
        %v325 = vrot.slane %v324, 4
        %v326 = vmax.f32 %v324, %v325
        %v327 = vrot.slane %v326, 2
        %v328 = vmax.f32 %v326, %v327
        %v329 = vrot.slane %v328, 1
        %v330 = vmax.f32 %v328, %v329
        %v333 = vcombine.low %v323, %v330
        %v335 = vsub.f32 %v311, %v333
        %v336 = vmul.f32 %v335, 1.442695
        %v337 = vpow.pop %v336
        %v339 = vcombine.high %v337, %v337
        %v341 = vsel %vm316, %v337, 0.0
        %v342 = vrot.slane %v341, 4
        %v343 = vadd.f32 %v341, %v342
        %v344 = vrot.slane %v343, 2
        %v345 = vadd.f32 %v343, %v344
        %v346 = vrot.slane %v345, 1
        %v347 = vadd.f32 %v345, %v346
        %v348 = vsel %vm316, %v339, 0.0
        %v349 = vrot.slane %v348, 4
        %v350 = vadd.f32 %v348, %v349
        %v351 = vrot.slane %v350, 2
        %v352 = vadd.f32 %v350, %v351
        %v353 = vrot.slane %v352, 1
        %v354 = vadd.f32 %v352, %v353
        %vm355 = vcmp.ne.s32.totalorder %v312, 255
        %v356 = vsel %vm355, %v312, 4294967295
        %v357 = vlaneseq
        %v358 = vshrl.u32 %v357, 7
        %v359 = vlaneseq
        %v360 = vshrl.u32 %v359, 7
        %v361 = vsub.s32 0, %v360
        %v362 = vrot.slane %v356, %v361
        %v363 = vlaneseq
        %v364 = vshrl.u32 %v363, 7
        %v365 = vsub.s32 1, %v364
        %v366 = vrot.slane %v356, %v365
        %vm367 = vcmp.eq.s32.totalorder %v358, %v362
        %vm368 = vcmp.eq.s32.totalorder %v358, %v366
        %v369 = vsel %vm367, %v311, 0.0
        %v370 = vsel %vm368, %v314, 0.0
        %v371 = vsel %vm316, %v369, 0.0
        %v372 = vrot.slane %v371, 4
        %v373 = vadd.f32 %v371, %v372
        %v374 = vrot.slane %v373, 2
        %v375 = vadd.f32 %v373, %v374
        %v376 = vrot.slane %v375, 1
        %v377 = vadd.f32 %v375, %v376
        %v378 = vsel %vm316, %v370, 0.0
        %v379 = vrot.slane %v378, 4
        %v380 = vadd.f32 %v378, %v379
        %v381 = vrot.slane %v380, 2
        %v382 = vadd.f32 %v380, %v381
        %v383 = vrot.slane %v382, 1
        %v384 = vadd.f32 %v382, %v383
        %v385 = vsel %vm367, %v337, 0.0
        %v386 = vsel %vm368, %v339, 0.0
        %v387 = vsel %vm316, %v385, 0.0
        %v388 = vrot.slane %v387, 4
        %v389 = vadd.f32 %v387, %v388
        %v390 = vrot.slane %v389, 2
        %v391 = vadd.f32 %v389, %v390
        %v392 = vrot.slane %v391, 1
        %v393 = vadd.f32 %v391, %v392
        %v394 = vsel %vm316, %v386, 0.0
        %v395 = vrot.slane %v394, 4
        %v396 = vadd.f32 %v394, %v395
        %v397 = vrot.slane %v396, 2
        %v398 = vadd.f32 %v396, %v397
        %v399 = vrot.slane %v398, 1
        %v400 = vadd.f32 %v398, %v399
        %v401 = vsub.f32 %v377, %v323
        %v402 = vsub.f32 %v384, %v330
        %v403 = vlog2.pop %v347
        %v404 = vmul.f32 %v403, 0.6931472
        %v405 = vlog2.pop %v354
        %v406 = vmul.f32 %v405, 0.6931472
        %v407 = vsub.f32 %v401, %v404
        %v408 = vsub.f32 %v402, %v406
        %v409 = vrcp.pop %v347
        %v410 = vmul.f32 %v393, %v409
        %v411 = vrcp.pop %v354
        %v412 = vmul.f32 %v400, %v411
        %v413 = vsub.f32 1.0, %v410
        %v414 = vsub.f32 1.0, %v412
        %v415 = vmul.f32 %v413, %v413
        %v416 = vmul.f32 %v414, %v414
        %v417 = vmul.f32 %v415, %v407
        %v418 = vmul.f32 %v416, %v408
        %v419 = vld [vmem:[#allocation2] sm:$0x3]
        %v420 = vsub.f32 0.0, %v417
        %v421 = vsub.f32 0.0, %v418
        %v424 = vcombine.low %v420, %v421
        %v426 = vunpack.c.l.s4 1966171168
        %v427 = vunpack.c.0.s8 %v426
        %v428 = vlaneseq
        %v429 = vshrl.u32 %v428, 7
        %v430 = vsub.s32 %v427, %v429
        %v431 = vrot.slane %v424, %v430
        %v433 = vunpack.c.l.s4 1966171168
        %v434 = vunpack.c.0.s8 %v433
        %v435 = vlaneseq
        %v436 = vshrl.u32 %v435, 7
        %v437 = vsub.s32 %v434, %v436
        %v438 = vrot.slane %v431, %v437
        %v440 = vsel %vm355, %v438, 0.0
        %v441 = vadd.f32 %v419, %v440
        %v442 = vlaneseq
        %vm443 = vcmp.ge.s32.totalorder %v442, 0
        %vm444 = vcmp.lt.s32.totalorder %v442, 256
        %vm445 = vmand %vm443, %vm444
        %446 = vst.msk [vmem:[#allocation2] sm:$0x3] %vm445, %v441
        %v447 = vld [vmem:[#allocation3] sm:$0x3]
        %v448 = vsel %vm355, 1, 0
        %v449 = vcvt.s32.f32 %v448
        %v450 = vadd.f32 %v447, %v449
        %451 = vst.msk [vmem:[#allocation3] sm:$0x3] %vm445, %v450
        // Predicated region
        $region41: #{tpu_custom_call.1} parent=27 // pred_check
          %p452 = pneg %p301
        $region42: #{tpu_custom_call.1} parent=27 // pred_check_branch
          %454 = sbr.rel (%p452) target = $region44
        $region43: #{tpu_custom_call.1} parent=27 // pred_region
          %v455 = vld [vmem:[#allocation2] sm:$0x3]
          %v457 = vlaneseq
          %v458 = vshrl.u32 %v457, 7
          %v459 = vsub.s32 0, %v458
          %v460 = vrot.slane %v455, %v459
          %v461 = vlaneseq
          %v462 = vshrl.u32 %v461, 7
          %v463 = vsub.s32 1, %v462
          %v464 = vrot.slane %v455, %v463
          %vm467 = vcmask 1040384
          %v468 = vsel %vm467, %v460, 0.0
          %v469 = vsel %vm467, %v464, 0.0
          %v470 = vadd.f32 %v468, %v469
          %471 = vadd.xlane.f32.xlu0 %v470
          %v472 = vpop.xlane.xlu0 %471
          %v473 = vrot.slane %v472, 4
          %v474 = vadd.f32 %v472, %v473
          %v475 = vrot.slane %v474, 2
          %v476 = vadd.f32 %v474, %v475
          %v477 = vrot.slane %v476, 1
          %v478 = vadd.f32 %v476, %v477
          %s479 = vtos %v478
          %v480 = vstv %s479
          %vm481 = vcmask 0
          %482 = vst.msk [vmem:[%s294] sm:$0x1] %vm481, %v480
          %v483 = vld [vmem:[#allocation3] sm:$0x3]
          %v485 = vlaneseq
          %v486 = vshrl.u32 %v485, 7
          %v487 = vsub.s32 0, %v486
          %v488 = vrot.slane %v483, %v487
          %v489 = vlaneseq
          %v490 = vshrl.u32 %v489, 7
          %v491 = vsub.s32 1, %v490
          %v492 = vrot.slane %v483, %v491
          %v495 = vsel %vm467, %v488, 0.0
          %v496 = vsel %vm467, %v492, 0.0
          %v497 = vadd.f32 %v495, %v496
          %498 = vadd.xlane.f32.xlu0 %v497
          %v499 = vpop.xlane.xlu0 %498
          %v500 = vrot.slane %v499, 4
          %v501 = vadd.f32 %v499, %v500
          %v502 = vrot.slane %v501, 2
          %v503 = vadd.f32 %v501, %v502
          %v504 = vrot.slane %v503, 1
          %v505 = vadd.f32 %v503, %v504
          %s506 = vtos %v505
          %v507 = vstv %s506
          %508 = vst.msk [vmem:[%s300] sm:$0x1] %vm481, %v507
        $region44: #{tpu_custom_call.1} parent=27 // pred_fallthru
          _
        %p509 = scmp.lt.s32.totalorder %s26, 1
        %s510 = scalar_select %p509, %s26, 1
        %p511 = scmp.lt.s32.totalorder %s27, 0
        %s512 = scalar_select %p511, %s27, 0
        %s513 = sadd.s32 %s512, %s510
        %s514 = scalar_lea.vmem %s2, %s513
        %p515 = scmp.lt.s32.totalorder %s26, 1
        %s516 = scalar_select %p515, %s26, 1
        %p517 = scmp.lt.s32.totalorder %s27, 0
        %s518 = scalar_select %p517, %s27, 0
        %s519 = sadd.s32 %s518, %s516
        %s520 = scalar_lea.vmem %s3, %s519
        // Predicated region
        $region45: #{tpu_custom_call.1} parent=27 // pred_check
          %p521 = pneg %p128
        $region46: #{tpu_custom_call.1} parent=27 // pred_check_branch
          %523 = sbr.rel (%p521) target = $region48
        $region47: #{tpu_custom_call.1} parent=27 // pred_region
          _
        $region48: #{tpu_custom_call.1} parent=27 // pred_fallthru
          _
        // Predicated region
        $region49: #{tpu_custom_call.1} parent=27 // pred_check
          %p524 = pneg %p156
        $region50: #{tpu_custom_call.1} parent=27 // pred_check_branch
          %526 = sbr.rel (%p524) target = $region52
        $region51: #{tpu_custom_call.1} parent=27 // pred_region
          _
        $region52: #{tpu_custom_call.1} parent=27 // pred_fallthru
          _
      $region28: #{tpu_custom_call.1} parent=5 // pred_fallthru
        _
      %p527 = scmp.le.s32.totalorder 2, %s16
      // Predicated region
      $region53: #{tpu_custom_call.1} parent=5 // pred_check
        %p528 = pneg %p527
      $region54: #{tpu_custom_call.1} parent=5 // pred_check_branch
        %530 = sbr.rel (%p528) target = $region56
      $region55: #{tpu_custom_call.1} parent=5 // pred_region
        %s531 = ssub.s32 %s16, 2
        // Predicated region
        $region57: #{tpu_custom_call.1} parent=55 // pred_check
          %p532 = pneg %p134
        $region58: #{tpu_custom_call.1} parent=55 // pred_check_branch
          %534 = sbr.rel (%p532) target = $region60
        $region59: #{tpu_custom_call.1} parent=55 // pred_region
          %p535 = scmp.lt.s32.totalorder %s29, 1
          %s536 = scalar_select %p535, %s29, 1
          %p537 = scmp.lt.s32.totalorder %s30, 0
          %s538 = scalar_select %p537, %s30, 0
          %s539 = sadd.s32 %s538, %s536
          %s540 = scalar_lea.vmem %s2, %s539
        $region60: #{tpu_custom_call.1} parent=55 // pred_fallthru
          _
        // Predicated region
        $region61: #{tpu_custom_call.1} parent=55 // pred_check
          %p541 = pneg %p162
        $region62: #{tpu_custom_call.1} parent=55 // pred_check_branch
          %543 = sbr.rel (%p541) target = $region64
        $region63: #{tpu_custom_call.1} parent=55 // pred_region
          %p544 = scmp.lt.s32.totalorder %s29, 1
          %s545 = scalar_select %p544, %s29, 1
          %p546 = scmp.lt.s32.totalorder %s30, 0
          %s547 = scalar_select %p546, %s30, 0
          %s548 = sadd.s32 %s547, %s545
          %s549 = scalar_lea.vmem %s3, %s548
        $region64: #{tpu_custom_call.1} parent=55 // pred_fallthru
          _
      $region56: #{tpu_custom_call.1} parent=5 // pred_fallthru
        _
    $region6: #{tpu_custom_call.1} parent=1 // loop_footer
      %s20 = sadd.s32 1, %s16
    $region7: #{tpu_custom_call.1} parent=1 // loop_footer_branch
      %15 = sbr.rel target = $region3
    $region8: #{tpu_custom_call.1} parent=1 // loop_exit
      _
    %550 = vsyncpa [#allocation5], 1
    %s551 = scalar_lea.sflag [#allocation5], 1
    %552 = vsyncpa %s551, 1
    %553 = vsyncpa [#allocation7], 1
    %s554 = scalar_lea.sflag [#allocation7], 1
    %555 = vsyncpa %s554, 1

</llo_original>
